<compile_context>
chip_gen: v7x
topology: tpu7x:2x2x1
jax: 0.10.0
libtpu: 0.0.40
codegen_flags: <defaults>
</compile_context>

<pallas_src>
import functools

import numpy as np

import jax
import jax.numpy as jnp
from jax.experimental import pallas as pl
from jax.experimental.pallas import tpu as pltpu


# --------------------------------------------------------------------------- kernel

def _stage_conv_bn_relu(p_ref, w_ref, b_ref, Nb, H):
    """One fused 3x3-conv + folded-BN-bias + ReLU stage.

    p_ref: (Nb, H+2, W*Ci) bf16 scratch, rows 0 and H+1 are zero halo
    w_ref: (3, W*Ci, W*Co) bf16 banded weights (kw taps + W-boundary folded in)
    b_ref: (1, W*Co) f32 folded BN bias, tiled over W
    returns (Nb*H, W*Co) f32, post-ReLU
    """
    wci = p_ref.shape[-1]
    wco = w_ref.shape[-1]
    # Accumulator starts at the folded bias (single hoisted broadcast).
    acc = jnp.broadcast_to(b_ref[...], (Nb * H, wco)).astype(jnp.float32)
    # 3 MXU dots (one per kh row tap), bf16 operands, f32 accumulation.
    for kh in range(3):
        lhs = p_ref[:, kh:kh + H, :].reshape(Nb * H, wci)
        acc = acc + jnp.dot(lhs, w_ref[kh], preferred_element_type=jnp.float32)
    return jnp.maximum(acc, 0.0)  # ReLU, f32 epilogue (v5e-safe)


def _conv_module_kernel(H, x_ref, w1_ref, b1_ref, w2_ref, b2_ref, o_ref,
                        p1_ref, p2_ref):
    """Fused (conv3x3 -> BN -> ReLU) x2 for one batch block; intermediate stays in VMEM."""
    Nb = x_ref.shape[0]
    wci = p1_ref.shape[-1]
    wcm = p2_ref.shape[-1]
    wco = o_ref.shape[-1]

    # ---- stage 1: zero only the 2 halo rows (every grid step), copy interior once ----
    p1_ref[:, 0:1, :] = jnp.zeros((Nb, 1, wci), jnp.bfloat16)
    p1_ref[:, H + 1:H + 2, :] = jnp.zeros((Nb, 1, wci), jnp.bfloat16)
    p1_ref[:, 1:H + 1, :] = x_ref[...]                       # already bf16
    h1 = _stage_conv_bn_relu(p1_ref, w1_ref, b1_ref, Nb, H)  # (Nb*H, W*Cmid) f32

    # ---- stage 2: intermediate never leaves VMEM; single f32->bf16 cast ----
    p2_ref[:, 0:1, :] = jnp.zeros((Nb, 1, wcm), jnp.bfloat16)
    p2_ref[:, H + 1:H + 2, :] = jnp.zeros((Nb, 1, wcm), jnp.bfloat16)
    p2_ref[:, 1:H + 1, :] = h1.reshape(Nb, H, wcm).astype(jnp.bfloat16)
    y = _stage_conv_bn_relu(p2_ref, w2_ref, b2_ref, Nb, H)   # (Nb*H, W*Cout) f32

    # Lane-dense (W*Cout = 128) unmasked store.
    o_ref[...] = y.reshape(Nb, H, wco).astype(o_ref.dtype)


# --------------------------------------------------------------------------- wrapper

def _pick_batch_block(n):
    """Largest Nb in {8,4,2} that still leaves >=2 grid steps (megacore), else 1."""
    for nb in (8, 4, 2):
        if n % nb == 0 and n // nb >= 2:
            return nb
    return 1 if n >= 2 else n


def fused_conv_module(x2d, w1b, b1r, w2b, b2r, H, W, Cout):
    """x2d: (N, H, W*Cin) bf16; w*b: (3, W*Ci, W*Co) bf16; b*r: (1, W*Co) f32."""
    N = x2d.shape[0]
    wci = x2d.shape[-1]
    wcm = w1b.shape[-1]
    wco = W * Cout
    Nb = _pick_batch_block(N)
    kernel = functools.partial(_conv_module_kernel, H)
    # TODO(synk): for large images tile H into row blocks with a 2-row halo (and budget
    # scratches for v7x's 64 MiB VMEM via vmem_limit_bytes); whole-image blocks are fine
    # at these small shapes.
    return pl.pallas_call(
        kernel,
        out_shape=jax.ShapeDtypeStruct((N, H, wco), jnp.float32),
        grid=(N // Nb,),
        in_specs=[
            pl.BlockSpec((Nb, H, wci), lambda n: (n, 0, 0)),
            pl.BlockSpec((3, wci, wcm), lambda n: (0, 0, 0)),
            pl.BlockSpec((1, wcm), lambda n: (0, 0)),
            pl.BlockSpec((3, wcm, wco), lambda n: (0, 0, 0)),
            pl.BlockSpec((1, wco), lambda n: (0, 0)),
        ],
        out_specs=pl.BlockSpec((Nb, H, wco), lambda n: (n, 0, 0)),
        scratch_shapes=[
            pltpu.VMEM((Nb, H + 2, wci), jnp.bfloat16),
            pltpu.VMEM((Nb, H + 2, wcm), jnp.bfloat16),
        ],
        compiler_params=pltpu.CompilerParams(
            dimension_semantics=("parallel",)),
    )(x2d, w1b, b1r, w2b, b2r)


# --------------------------------------------------------------------- host-side prep

def fold_conv_bn(w, gamma, beta, mean, var, eps=1e-5):
    """Fold inference BatchNorm into the conv weight (scale) and an additive bias (f32)."""
    scale = gamma / jnp.sqrt(var + eps)                  # (Co,)
    w_folded = (w * scale).astype(jnp.float32)           # (3, 3, Ci, Co)
    bias = (beta - mean * scale).astype(jnp.float32)     # (Co,)
    return w_folded, bias


def build_banded_weights(w_folded, W):
    """(3,3,Ci,Co) folded weights -> (3, W*Ci, W*Co) bf16 block-Toeplitz matrices.

    Folds the kw taps and the W-direction zero padding into the weight matrix, so the
    kernel performs one (Nb*H, W*Ci) x (W*Ci, W*Co) MXU dot per kh tap.
    """
    KH, KW, Ci, Co = w_folded.shape
    sel = np.zeros((KW, W, W), np.float32)               # sel[kw, w_in, w_out]
    for kw in range(KW):
        for w_out in range(W):
            w_in = w_out + kw - 1                        # padding = 1
            if 0 <= w_in < W:
                sel[kw, w_in, w_out] = 1.0
    # B[kh, w_in, ci, w_out, co] = sum_kw sel[kw, w_in, w_out] * w[kh, kw, ci, co]
    banded = jnp.einsum("kac,hkio->haico", jnp.asarray(sel), w_folded)
    return banded.reshape(KH, W * Ci, W * Co).astype(jnp.bfloat16)


def conv_module_forward(x_nchw, params, eps=1e-5):
    """ConvModule forward (eval mode). Input/Output follow PyTorch NCHW convention."""
    N, Cin, H, W = x_nchw.shape
    Cmid = params["w1"].shape[-1]
    Cout = params["w2"].shape[-1]

    x = jnp.transpose(x_nchw, (0, 2, 3, 1))              # NCHW -> NHWC
    w1f, b1 = fold_conv_bn(params["w1"], params["bn1_gamma"], params["bn1_beta"],
                           params["bn1_mean"], params["bn1_var"], eps)
    w2f, b2 = fold_conv_bn(params["w2"], params["bn2_gamma"], params["bn2_beta"],
                           params["bn2_mean"], params["bn2_var"], eps)
    w1b = build_banded_weights(w1f, W)                   # (3, W*Cin,  W*Cmid) bf16
    w2b = build_banded_weights(w2f, W)                   # (3, W*Cmid, W*Cout) bf16
    b1r = jnp.tile(b1, W).reshape(1, W * Cmid).astype(jnp.float32)
    b2r = jnp.tile(b2, W).reshape(1, W * Cout).astype(jnp.float32)

    x2d = x.reshape(N, H, W * Cin).astype(jnp.bfloat16)  # lane-dense, half HBM read
    y2d = fused_conv_module(x2d, w1b, b1r, w2b, b2r, H, W, Cout)
    y = y2d.reshape(N, H, W, Cout)
    # TODO(synk): nn.Dropout(0.1) in training mode needs pltpu.prng_* masking; identity
    # in eval/inference mode.
    return jnp.transpose(y, (0, 3, 1, 2))                # NHWC -> NCHW


# ------------------------------------------------------------------------ params / ref

def make_params(key, in_channels, out_channels):
    ks = jax.random.split(key, 8)
    # PyTorch weight shape (Cout, Cin, 3, 3) -> stored here as (3, 3, Cin, Cout).
    w1 = 0.1 * jax.random.normal(ks[0], (3, 3, in_channels, out_channels), jnp.float32)
    w2 = 0.1 * jax.random.normal(ks[1], (3, 3, out_channels, out_channels), jnp.float32)
    return dict(
        w1=w1, w2=w2,
        bn1_gamma=1.0 + 0.1 * jax.random.normal(ks[2], (out_channels,), jnp.float32),
        bn1_beta=0.1 * jax.random.normal(ks[3], (out_channels,), jnp.float32),
        bn1_mean=0.05 * jax.random.normal(ks[4], (out_channels,), jnp.float32),
        bn1_var=jnp.abs(1.0 + 0.1 * jax.random.normal(ks[5], (out_channels,), jnp.float32)),
        bn2_gamma=1.0 + 0.1 * jax.random.normal(ks[6], (out_channels,), jnp.float32),
        bn2_beta=0.1 * jax.random.normal(ks[7], (out_channels,), jnp.float32),
        bn2_mean=jnp.zeros((out_channels,), jnp.float32),
        bn2_var=jnp.ones((out_channels,), jnp.float32),
    )


def _reference_forward(x_nchw, params, eps=1e-5):
    """Pure-JAX reference (XLA conv) using the same folded bf16 weights as the kernel."""
    x = jnp.transpose(x_nchw, (0, 2, 3, 1))
    w1f, b1 = fold_conv_bn(params["w1"], params["bn1_gamma"], params["bn1_beta"],
                           params["bn1_mean"], params["bn1_var"], eps)
    w2f, b2 = fold_conv_bn(params["w2"], params["bn2_gamma"], params["bn2_beta"],
                           params["bn2_mean"], params["bn2_var"], eps)

    def block(inp, wf, b):
        dn = jax.lax.conv_dimension_numbers(inp.shape, wf.shape, ("NHWC", "HWIO", "NHWC"))
        y = jax.lax.conv_general_dilated(
            inp.astype(jnp.bfloat16), wf.astype(jnp.bfloat16), (1, 1), "SAME",
            dimension_numbers=dn, preferred_element_type=jnp.float32)
        return jnp.maximum(y + b.reshape(1, 1, 1, -1), 0.0)

    y = block(x, w1f, b1)
    y = block(y, w2f, b2)
    return jnp.transpose(y, (0, 3, 1, 2))


if __name__ == "__main__":
    key = jax.random.PRNGKey(0)
    k_x, k_p = jax.random.split(key)

    N, C_IN, C_OUT, H, W = 2, 4, 8, 16, 16
    x = jax.random.normal(k_x, (N, C_IN, H, W), jnp.float32)   # PyTorch NCHW input
    params = make_params(k_p, C_IN, C_OUT)

    out = jax.block_until_ready(conv_module_forward(x, params))
    ref = jax.block_until_ready(_reference_forward(x, params))

    assert out.shape == (N, C_OUT, H, W)
    assert jnp.allclose(out, ref, atol=2e-3, rtol=2e-3), "mismatch vs JAX reference"

    print("KERNEL_OK")
</pallas_src>

<mosaic_0001>
module attributes {stable_mosaic.version = 11 : i64} {
  func.func @_conv_module_kernel(%arg0: i32, %arg1: memref<1x16x64xbf16, #tpu.memory_space<vmem>>, %arg2: memref<3x64x128xbf16, #tpu.memory_space<vmem>>, %arg3: memref<1x128xf32, #tpu.memory_space<vmem>>, %arg4: memref<3x128x128xbf16, #tpu.memory_space<vmem>>, %arg5: memref<1x128xf32, #tpu.memory_space<vmem>>, %arg6: memref<1x16x128xf32, #tpu.memory_space<vmem>>, %arg7: memref<1x18x64xbf16, #tpu.memory_space<vmem>>, %arg8: memref<1x18x128xbf16, #tpu.memory_space<vmem>>) attributes {dimension_semantics = [#tpu.dimension_semantics<parallel>], iteration_bounds = array<i64: 2>, scalar_prefetch = 0 : i64, scratch_operands = 2 : i64, tpu.core_type = #tpu.core_type<tc>, window_params = [{transform_indices = @transform_0, window_bounds = array<i64: 1, 16, 64>}, {pipeline_mode = #tpu.pipeline_mode<synchronous>, transform_indices = @transform_1, window_bounds = array<i64: 3, 64, 128>}, {pipeline_mode = #tpu.pipeline_mode<synchronous>, transform_indices = @transform_2, window_bounds = array<i64: 1, 128>}, {pipeline_mode = #tpu.pipeline_mode<synchronous>, transform_indices = @transform_3, window_bounds = array<i64: 3, 128, 128>}, {pipeline_mode = #tpu.pipeline_mode<synchronous>, transform_indices = @transform_4, window_bounds = array<i64: 1, 128>}, {transform_indices = @transform_5, window_bounds = array<i64: 1, 16, 128>}]} {
    %cst = arith.constant 0.000000e+00 : bf16
    %0 = vector.broadcast %cst : bf16 to vector<1x1x64xbf16>
    %c0 = arith.constant 0 : index
    %c0_0 = arith.constant 0 : index
    %c0_1 = arith.constant 0 : index
    %1 = vector.load %arg7[%c0, %c0_0, %c0_1] : memref<1x18x64xbf16, #tpu.memory_space<vmem>>, vector<1x1x64xbf16>
    tpu.vector_store %arg7[%c0, %c0_0, %c0_1], %0 {strides = array<i32>} : memref<1x18x64xbf16, #tpu.memory_space<vmem>>, vector<1x1x64xbf16>,
    %cst_2 = arith.constant 0.000000e+00 : bf16
    %2 = vector.broadcast %cst_2 : bf16 to vector<1x1x64xbf16>
    %c0_3 = arith.constant 0 : index
    %c17 = arith.constant 17 : index
    %c0_4 = arith.constant 0 : index
    %3 = vector.load %arg7[%c0_3, %c17, %c0_4] : memref<1x18x64xbf16, #tpu.memory_space<vmem>>, vector<1x1x64xbf16>
    tpu.vector_store %arg7[%c0_3, %c17, %c0_4], %2 {strides = array<i32>} : memref<1x18x64xbf16, #tpu.memory_space<vmem>>, vector<1x1x64xbf16>,
    %c0_5 = arith.constant 0 : index
    %c0_6 = arith.constant 0 : index
    %c0_7 = arith.constant 0 : index
    %4 = vector.load %arg1[%c0_5, %c0_6, %c0_7] : memref<1x16x64xbf16, #tpu.memory_space<vmem>>, vector<1x16x64xbf16>
    %c0_8 = arith.constant 0 : index
    %c1 = arith.constant 1 : index
    %c0_9 = arith.constant 0 : index
    %5 = vector.load %arg7[%c0_8, %c1, %c0_9] : memref<1x18x64xbf16, #tpu.memory_space<vmem>>, vector<1x16x64xbf16>
    tpu.vector_store %arg7[%c0_8, %c1, %c0_9], %4 {strides = array<i32>} : memref<1x18x64xbf16, #tpu.memory_space<vmem>>, vector<1x16x64xbf16>,
    %c0_10 = arith.constant 0 : index
    %c0_11 = arith.constant 0 : index
    %6 = vector.load %arg3[%c0_10, %c0_11] : memref<1x128xf32, #tpu.memory_space<vmem>>, vector<1x128xf32>
    %7 = vector.shape_cast %6 : vector<1x128xf32> to vector<1x128xf32>
    %8 = vector.broadcast %7 : vector<1x128xf32> to vector<16x128xf32>
    %c0_12 = arith.constant 0 : index
    %c0_13 = arith.constant 0 : index
    %c0_14 = arith.constant 0 : index
    %9 = vector.load %arg7[%c0_12, %c0_13, %c0_14] : memref<1x18x64xbf16, #tpu.memory_space<vmem>>, vector<1x16x64xbf16>
    %10 = vector.shape_cast %9 : vector<1x16x64xbf16> to vector<16x64xbf16>
    %c0_15 = arith.constant 0 : index
    %c0_16 = arith.constant 0 : index
    %c0_17 = arith.constant 0 : index
    %11 = vector.load %arg2[%c0_15, %c0_16, %c0_17] : memref<3x64x128xbf16, #tpu.memory_space<vmem>>, vector<1x64x128xbf16>
    %12 = vector.shape_cast %11 : vector<1x64x128xbf16> to vector<64x128xbf16>
    %cst_18 = arith.constant dense<0.000000e+00> : vector<16x128xf32>
    %13 = tpu.matmul %10, %12, %cst_18 {dimension_numbers = #tpu.dot_dimension_numbers<[1], [0], [0], [1], [0, 0, 1, 1], [], []>} : vector<16x64xbf16>, vector<64x128xbf16>, vector<16x128xf32> -> vector<16x128xf32>
    %14 = arith.addf %8, %13 : vector<16x128xf32>
    %c0_19 = arith.constant 0 : index
    %c1_20 = arith.constant 1 : index
    %c0_21 = arith.constant 0 : index
    %15 = vector.load %arg7[%c0_19, %c1_20, %c0_21] : memref<1x18x64xbf16, #tpu.memory_space<vmem>>, vector<1x16x64xbf16>
    %16 = vector.shape_cast %15 : vector<1x16x64xbf16> to vector<16x64xbf16>
    %c1_22 = arith.constant 1 : index
    %c0_23 = arith.constant 0 : index
    %c0_24 = arith.constant 0 : index
    %17 = vector.load %arg2[%c1_22, %c0_23, %c0_24] : memref<3x64x128xbf16, #tpu.memory_space<vmem>>, vector<1x64x128xbf16>
    %18 = vector.shape_cast %17 : vector<1x64x128xbf16> to vector<64x128xbf16>
    %cst_25 = arith.constant dense<0.000000e+00> : vector<16x128xf32>
    %19 = tpu.matmul %16, %18, %cst_25 {dimension_numbers = #tpu.dot_dimension_numbers<[1], [0], [0], [1], [0, 0, 1, 1], [], []>} : vector<16x64xbf16>, vector<64x128xbf16>, vector<16x128xf32> -> vector<16x128xf32>
    %20 = arith.addf %14, %19 : vector<16x128xf32>
    %c0_26 = arith.constant 0 : index
    %c2 = arith.constant 2 : index
    %c0_27 = arith.constant 0 : index
    %21 = vector.load %arg7[%c0_26, %c2, %c0_27] : memref<1x18x64xbf16, #tpu.memory_space<vmem>>, vector<1x16x64xbf16>
    %22 = vector.shape_cast %21 : vector<1x16x64xbf16> to vector<16x64xbf16>
    %c2_28 = arith.constant 2 : index
    %c0_29 = arith.constant 0 : index
    %c0_30 = arith.constant 0 : index
    %23 = vector.load %arg2[%c2_28, %c0_29, %c0_30] : memref<3x64x128xbf16, #tpu.memory_space<vmem>>, vector<1x64x128xbf16>
    %24 = vector.shape_cast %23 : vector<1x64x128xbf16> to vector<64x128xbf16>
    %cst_31 = arith.constant dense<0.000000e+00> : vector<16x128xf32>
    %25 = tpu.matmul %22, %24, %cst_31 {dimension_numbers = #tpu.dot_dimension_numbers<[1], [0], [0], [1], [0, 0, 1, 1], [], []>} : vector<16x64xbf16>, vector<64x128xbf16>, vector<16x128xf32> -> vector<16x128xf32>
    %26 = arith.addf %20, %25 : vector<16x128xf32>
    %cst_32 = arith.constant 0.000000e+00 : f32
    %27 = vector.broadcast %cst_32 : f32 to vector<16x128xf32>
    %28 = arith.maximumf %26, %27 : vector<16x128xf32>
    %cst_33 = arith.constant 0.000000e+00 : bf16
    %29 = vector.broadcast %cst_33 : bf16 to vector<1x1x128xbf16>
    %c0_34 = arith.constant 0 : index
    %c0_35 = arith.constant 0 : index
    %c0_36 = arith.constant 0 : index
    %30 = vector.load %arg8[%c0_34, %c0_35, %c0_36] : memref<1x18x128xbf16, #tpu.memory_space<vmem>>, vector<1x1x128xbf16>
    tpu.vector_store %arg8[%c0_34, %c0_35, %c0_36], %29 {strides = array<i32>} : memref<1x18x128xbf16, #tpu.memory_space<vmem>>, vector<1x1x128xbf16>,
    %cst_37 = arith.constant 0.000000e+00 : bf16
    %31 = vector.broadcast %cst_37 : bf16 to vector<1x1x128xbf16>
    %c0_38 = arith.constant 0 : index
    %c17_39 = arith.constant 17 : index
    %c0_40 = arith.constant 0 : index
    %32 = vector.load %arg8[%c0_38, %c17_39, %c0_40] : memref<1x18x128xbf16, #tpu.memory_space<vmem>>, vector<1x1x128xbf16>
    tpu.vector_store %arg8[%c0_38, %c17_39, %c0_40], %31 {strides = array<i32>} : memref<1x18x128xbf16, #tpu.memory_space<vmem>>, vector<1x1x128xbf16>,
    %33 = vector.shape_cast %28 : vector<16x128xf32> to vector<1x16x128xf32>
    %34 = arith.truncf %33 : vector<1x16x128xf32> to vector<1x16x128xbf16>
    %c0_41 = arith.constant 0 : index
    %c1_42 = arith.constant 1 : index
    %c0_43 = arith.constant 0 : index
    %35 = vector.load %arg8[%c0_41, %c1_42, %c0_43] : memref<1x18x128xbf16, #tpu.memory_space<vmem>>, vector<1x16x128xbf16>
    tpu.vector_store %arg8[%c0_41, %c1_42, %c0_43], %34 {strides = array<i32>} : memref<1x18x128xbf16, #tpu.memory_space<vmem>>, vector<1x16x128xbf16>,
    %c0_44 = arith.constant 0 : index
    %c0_45 = arith.constant 0 : index
    %36 = vector.load %arg5[%c0_44, %c0_45] : memref<1x128xf32, #tpu.memory_space<vmem>>, vector<1x128xf32>
    %37 = vector.shape_cast %36 : vector<1x128xf32> to vector<1x128xf32>
    %38 = vector.broadcast %37 : vector<1x128xf32> to vector<16x128xf32>
    %c0_46 = arith.constant 0 : index
    %c0_47 = arith.constant 0 : index
    %c0_48 = arith.constant 0 : index
    %39 = vector.load %arg8[%c0_46, %c0_47, %c0_48] : memref<1x18x128xbf16, #tpu.memory_space<vmem>>, vector<1x16x128xbf16>
    %40 = vector.shape_cast %39 : vector<1x16x128xbf16> to vector<16x128xbf16>
    %c0_49 = arith.constant 0 : index
    %c0_50 = arith.constant 0 : index
    %c0_51 = arith.constant 0 : index
    %41 = vector.load %arg4[%c0_49, %c0_50, %c0_51] : memref<3x128x128xbf16, #tpu.memory_space<vmem>>, vector<1x128x128xbf16>
    %42 = vector.shape_cast %41 : vector<1x128x128xbf16> to vector<128x128xbf16>
    %cst_52 = arith.constant dense<0.000000e+00> : vector<16x128xf32>
    %43 = tpu.matmul %40, %42, %cst_52 {dimension_numbers = #tpu.dot_dimension_numbers<[1], [0], [0], [1], [0, 0, 1, 1], [], []>} : vector<16x128xbf16>, vector<128x128xbf16>, vector<16x128xf32> -> vector<16x128xf32>
    %44 = arith.addf %38, %43 : vector<16x128xf32>
    %c0_53 = arith.constant 0 : index
    %c1_54 = arith.constant 1 : index
    %c0_55 = arith.constant 0 : index
    %45 = vector.load %arg8[%c0_53, %c1_54, %c0_55] : memref<1x18x128xbf16, #tpu.memory_space<vmem>>, vector<1x16x128xbf16>
    %46 = vector.shape_cast %45 : vector<1x16x128xbf16> to vector<16x128xbf16>
    %c1_56 = arith.constant 1 : index
    %c0_57 = arith.constant 0 : index
    %c0_58 = arith.constant 0 : index
    %47 = vector.load %arg4[%c1_56, %c0_57, %c0_58] : memref<3x128x128xbf16, #tpu.memory_space<vmem>>, vector<1x128x128xbf16>
    %48 = vector.shape_cast %47 : vector<1x128x128xbf16> to vector<128x128xbf16>
    %cst_59 = arith.constant dense<0.000000e+00> : vector<16x128xf32>
    %49 = tpu.matmul %46, %48, %cst_59 {dimension_numbers = #tpu.dot_dimension_numbers<[1], [0], [0], [1], [0, 0, 1, 1], [], []>} : vector<16x128xbf16>, vector<128x128xbf16>, vector<16x128xf32> -> vector<16x128xf32>
    %50 = arith.addf %44, %49 : vector<16x128xf32>
    %c0_60 = arith.constant 0 : index
    %c2_61 = arith.constant 2 : index
    %c0_62 = arith.constant 0 : index
    %51 = vector.load %arg8[%c0_60, %c2_61, %c0_62] : memref<1x18x128xbf16, #tpu.memory_space<vmem>>, vector<1x16x128xbf16>
    %52 = vector.shape_cast %51 : vector<1x16x128xbf16> to vector<16x128xbf16>
    %c2_63 = arith.constant 2 : index
    %c0_64 = arith.constant 0 : index
    %c0_65 = arith.constant 0 : index
    %53 = vector.load %arg4[%c2_63, %c0_64, %c0_65] : memref<3x128x128xbf16, #tpu.memory_space<vmem>>, vector<1x128x128xbf16>
    %54 = vector.shape_cast %53 : vector<1x128x128xbf16> to vector<128x128xbf16>
    %cst_66 = arith.constant dense<0.000000e+00> : vector<16x128xf32>
    %55 = tpu.matmul %52, %54, %cst_66 {dimension_numbers = #tpu.dot_dimension_numbers<[1], [0], [0], [1], [0, 0, 1, 1], [], []>} : vector<16x128xbf16>, vector<128x128xbf16>, vector<16x128xf32> -> vector<16x128xf32>
    %56 = arith.addf %50, %55 : vector<16x128xf32>
    %cst_67 = arith.constant 0.000000e+00 : f32
    %57 = vector.broadcast %cst_67 : f32 to vector<16x128xf32>
    %58 = arith.maximumf %56, %57 : vector<16x128xf32>
    %59 = vector.shape_cast %58 : vector<16x128xf32> to vector<1x16x128xf32>
    %c0_68 = arith.constant 0 : index
    %c0_69 = arith.constant 0 : index
    %c0_70 = arith.constant 0 : index
    %60 = vector.load %arg6[%c0_68, %c0_69, %c0_70] : memref<1x16x128xf32, #tpu.memory_space<vmem>>, vector<1x16x128xf32>
    tpu.vector_store %arg6[%c0_68, %c0_69, %c0_70], %59 {strides = array<i32>} : memref<1x16x128xf32, #tpu.memory_space<vmem>>, vector<1x16x128xf32>,
    return
  }
  func.func @transform_0(%arg0: i32) -> (i32, i32, i32) {
    %c0_i32 = arith.constant 0 : i32
    %c0_i32_0 = arith.constant 0 : i32
    %c0_i32_1 = arith.constant 0 : i32
    return %arg0, %c0_i32, %c0_i32_0 : i32, i32, i32
  }
  func.func @transform_1(%arg0: i32) -> (i32, i32, i32) {
    %c0_i32 = arith.constant 0 : i32
    %c0_i32_0 = arith.constant 0 : i32
    %c0_i32_1 = arith.constant 0 : i32
    %c0_i32_2 = arith.constant 0 : i32
    return %c0_i32, %c0_i32_0, %c0_i32_1 : i32, i32, i32
  }
  func.func @transform_2(%arg0: i32) -> (i32, i32) {
    %c0_i32 = arith.constant 0 : i32
    %c0_i32_0 = arith.constant 0 : i32
    %c0_i32_1 = arith.constant 0 : i32
    return %c0_i32, %c0_i32_0 : i32, i32
  }
  func.func @transform_3(%arg0: i32) -> (i32, i32, i32) {
    %c0_i32 = arith.constant 0 : i32
    %c0_i32_0 = arith.constant 0 : i32
    %c0_i32_1 = arith.constant 0 : i32
    %c0_i32_2 = arith.constant 0 : i32
    return %c0_i32, %c0_i32_0, %c0_i32_1 : i32, i32, i32
  }
  func.func @transform_4(%arg0: i32) -> (i32, i32) {
    %c0_i32 = arith.constant 0 : i32
    %c0_i32_0 = arith.constant 0 : i32
    %c0_i32_1 = arith.constant 0 : i32
    return %c0_i32, %c0_i32_0 : i32, i32
  }
  func.func @transform_5(%arg0: i32) -> (i32, i32, i32) {
    %c0_i32 = arith.constant 0 : i32
    %c0_i32_0 = arith.constant 0 : i32
    %c0_i32_1 = arith.constant 0 : i32
    return %arg0, %c0_i32, %c0_i32_0 : i32, i32, i32
  }
}

</mosaic_0001>

<llo_original>
// kernel: tpu_custom_call.1
$region0: #{tpu_custom_call.1}
  #allocation0 [shape = 'u32[]', space=smem, size = 0x4, offset = 0x4, fixed_abs, tag = 'smem constant byte address 0x4 - core index']
  #allocation1 [shape = 'u32[144,128]{1,0:T(1,128)}', space=vmem, size = 0x12000, scoped, tag = 'internal scratch']
  #allocation2 [shape = 'bf16[1,18,64]{2,1,0:T(8,128)(2,1)}', space=vmem, size = 0x1800, scoped, tag = 'scratch operand']
  #allocation3 [shape = 'bf16[1,18,128]{2,1,0:T(8,128)(2,1)}', space=vmem, size = 0x1800, scoped, tag = 'scratch operand']
  %s0 = inlined_call_operand.hbm [shape: bf16[2,16,64], index: 0, kind: input, shape index: {}]
  %s1 = inlined_call_operand.hbm [shape: bf16[3,64,128], index: 1, kind: input, shape index: {}]
  %s2 = inlined_call_operand.vmem [shape: f32[1,128], index: 2, kind: input, shape index: {}]
  %s3 = inlined_call_operand.hbm [shape: bf16[3,128,128], index: 3, kind: input, shape index: {}]
  %s4 = inlined_call_operand.vmem [shape: f32[1,128], index: 4, kind: input, shape index: {}]
  %s5 = inlined_call_operand.hbm [shape: f32[2,16,128], index: 5, kind: output, shape index: {}]
  %s6 = sld [smem:[#allocation0]]
  $region65: #{tpu_custom_call.1} parent=0
    _
  %s8 = ssub.s32 1, %s6
  %s9 = scalar_select 0, %s8, %s6
  $region1: #{tpu_custom_call.1} parent=0
    #allocation4 [shape = 'u8[8192]{0}', space=vmem, size = 0x2000, scoped, tag = 'input window, operand 0']
    #allocation5 [shape = 's32[2]{0}', space=sflag, size = 0x8, scoped, tag = 'scoped memory for tpu_custom_call.1']
    #allocation6 [shape = 's32[2]{0}', space=sflag, size = 0x8, scoped, tag = 'scoped memory for tpu_custom_call.1']
    #allocation7 [shape = 'u8[49152]{0}', space=vmem, size = 0xc000, scoped, tag = 'input window, operand 1, single buffered']
    #allocation8 [shape = 's32[1]{0}', space=sflag, size = 0x4, scoped, tag = 'scoped memory for tpu_custom_call.1']
    #allocation9 [shape = 'u8[98304]{0}', space=vmem, size = 0x18000, scoped, tag = 'input window, operand 3, single buffered']
    #allocation10 [shape = 'u8[16384]{0}', space=vmem, size = 0x4000, scoped, tag = 'output window, operand 0']
    %10 = vsyncpa [#allocation5], 0
    %s11 = scalar_lea.sflag [#allocation5], 1
    %12 = vsyncpa %s11, 0
    %13 = vsyncpa [#allocation8], 0
    %14 = vsyncpa [#allocation6], 0
    %s15 = scalar_lea.sflag [#allocation6], 1
    %16 = vsyncpa %s15, 0
    loop: start=0, step=1, limit=4
    $region2: #{tpu_custom_call.1} parent=1 // loop_pre_header
      _
    $region3: #{tpu_custom_call.1} parent=1 // loop_header
      %s18 = sphi 0, %s22
      %p19 = scmp.ge.s32.totalorder %s18, 4
      %s28 = sphi 0, %s30
      %s31 = sphi 0, %s28
      %s32 = sphi 0, %s31
      %s48 = sphi 0, %s32
      %s52 = sphi 0, %s52
      %s54 = sphi 0, %s52
      %s55 = sphi 0, %s54
      %s69 = sphi 0, %s55
      %s73 = sphi 0, %s73
      %s75 = sphi 0, %s73
      %s76 = sphi 0, %s75
      %s90 = sphi 0, %s76
      %s94 = sphi 0, %s94
      %s96 = sphi 0, %s94
      %s97 = sphi 0, %s96
      %s111 = sphi 0, %s97
      %s115 = sphi 0, %s115
      %s117 = sphi 0, %s115
      %s118 = sphi 0, %s117
      %s132 = sphi 0, %s118
      %s138 = sphi 0, %s140
      %s141 = sphi 0, %s138
      %s142 = sphi 0, %s141
      %s158 = sphi 0, %s142
    $region4: #{tpu_custom_call.1} parent=1 // loop_header_branch
      %21 = sbr.rel (%p19) target = $region8
    $region5: #{tpu_custom_call.1} parent=1 // loop_body
      %s23 = ssub.s32 %s18, 1
      %s24 = ssub.s32 %s18, 2
      %s25 = sadd.s32 %s18, 1
      %s26 = ssub.s32 %s18, %s25
      %p27 = scmp.eq.s32.totalorder %s26, 0
      %s29 = sadd.s32 %s28, 1
      %s30 = scalar_select %p27, %s28, %s29
      %p33 = pneg %p27
      %p34 = scmp.eq.s32.totalorder %s18, 1
      %p35 = por %p33, %p34
      %p36 = scmp.ne.s32.totalorder %s28, %s31
      %p37 = scmp.eq.s32.totalorder %s18, 0
      %p38 = por %p36, %p37
      %p39 = scmp.ne.s32.totalorder %s28, %s31
      %p40 = scmp.eq.s32.totalorder %s23, 1
      %p41 = por %p39, %p40
      %p42 = scmp.ne.s32.totalorder %s31, %s32
      %p43 = scmp.eq.s32.totalorder %s23, 0
      %p44 = por %p42, %p43
      %p45 = scmp.ne.s32.totalorder %s31, %s32
      %p46 = scmp.eq.s32.totalorder %s24, 1
      %p47 = por %p45, %p46
      %p49 = scmp.ne.s32.totalorder %s32, %s48
      %p50 = scmp.eq.s32.totalorder %s24, 0
      %p51 = por %p49, %p50
      %s53 = sadd.s32 %s52, 1
      %p56 = scmp.eq.s32.totalorder %s18, 1
      %p57 = scmp.ne.s32.totalorder %s52, %s54
      %p58 = scmp.eq.s32.totalorder %s18, 0
      %p59 = por %p57, %p58
      %p60 = scmp.ne.s32.totalorder %s52, %s54
      %p61 = scmp.eq.s32.totalorder %s23, 1
      %p62 = por %p60, %p61
      %p63 = scmp.ne.s32.totalorder %s54, %s55
      %p64 = scmp.eq.s32.totalorder %s23, 0
      %p65 = por %p63, %p64
      %p66 = scmp.ne.s32.totalorder %s54, %s55
      %p67 = scmp.eq.s32.totalorder %s24, 1
      %p68 = por %p66, %p67
      %p70 = scmp.ne.s32.totalorder %s55, %s69
      %p71 = scmp.eq.s32.totalorder %s24, 0
      %p72 = por %p70, %p71
      %s74 = sadd.s32 %s73, 1
      %p77 = scmp.eq.s32.totalorder %s18, 1
      %p78 = scmp.ne.s32.totalorder %s73, %s75
      %p79 = scmp.eq.s32.totalorder %s18, 0
      %p80 = por %p78, %p79
      %p81 = scmp.ne.s32.totalorder %s73, %s75
      %p82 = scmp.eq.s32.totalorder %s23, 1
      %p83 = por %p81, %p82
      %p84 = scmp.ne.s32.totalorder %s75, %s76
      %p85 = scmp.eq.s32.totalorder %s23, 0
      %p86 = por %p84, %p85
      %p87 = scmp.ne.s32.totalorder %s75, %s76
      %p88 = scmp.eq.s32.totalorder %s24, 1
      %p89 = por %p87, %p88
      %p91 = scmp.ne.s32.totalorder %s76, %s90
      %p92 = scmp.eq.s32.totalorder %s24, 0
      %p93 = por %p91, %p92
      %s95 = sadd.s32 %s94, 1
      %p98 = scmp.eq.s32.totalorder %s18, 1
      %p99 = scmp.ne.s32.totalorder %s94, %s96
      %p100 = scmp.eq.s32.totalorder %s18, 0
      %p101 = por %p99, %p100
      %p102 = scmp.ne.s32.totalorder %s94, %s96
      %p103 = scmp.eq.s32.totalorder %s23, 1
      %p104 = por %p102, %p103
      %p105 = scmp.ne.s32.totalorder %s96, %s97
      %p106 = scmp.eq.s32.totalorder %s23, 0
      %p107 = por %p105, %p106
      %p108 = scmp.ne.s32.totalorder %s96, %s97
      %p109 = scmp.eq.s32.totalorder %s24, 1
      %p110 = por %p108, %p109
      %p112 = scmp.ne.s32.totalorder %s97, %s111
      %p113 = scmp.eq.s32.totalorder %s24, 0
      %p114 = por %p112, %p113
      %s116 = sadd.s32 %s115, 1
      %p119 = scmp.eq.s32.totalorder %s18, 1
      %p120 = scmp.ne.s32.totalorder %s115, %s117
      %p121 = scmp.eq.s32.totalorder %s18, 0
      %p122 = por %p120, %p121
      %p123 = scmp.ne.s32.totalorder %s115, %s117
      %p124 = scmp.eq.s32.totalorder %s23, 1
      %p125 = por %p123, %p124
      %p126 = scmp.ne.s32.totalorder %s117, %s118
      %p127 = scmp.eq.s32.totalorder %s23, 0
      %p128 = por %p126, %p127
      %p129 = scmp.ne.s32.totalorder %s117, %s118
      %p130 = scmp.eq.s32.totalorder %s24, 1
      %p131 = por %p129, %p130
      %p133 = scmp.ne.s32.totalorder %s118, %s132
      %p134 = scmp.eq.s32.totalorder %s24, 0
      %p135 = por %p133, %p134
      %s136 = ssub.s32 %s18, %s25
      %p137 = scmp.eq.s32.totalorder %s136, 0
      %s139 = sadd.s32 %s138, 1
      %s140 = scalar_select %p137, %s138, %s139
      %p143 = pneg %p137
      %p144 = scmp.eq.s32.totalorder %s18, 1
      %p145 = por %p143, %p144
      %p146 = scmp.ne.s32.totalorder %s138, %s141
      %p147 = scmp.eq.s32.totalorder %s18, 0
      %p148 = por %p146, %p147
      %p149 = scmp.ne.s32.totalorder %s138, %s141
      %p150 = scmp.eq.s32.totalorder %s23, 1
      %p151 = por %p149, %p150
      %p152 = scmp.ne.s32.totalorder %s141, %s142
      %p153 = scmp.eq.s32.totalorder %s23, 0
      %p154 = por %p152, %p153
      %p155 = scmp.ne.s32.totalorder %s141, %s142
      %p156 = scmp.eq.s32.totalorder %s24, 1
      %p157 = por %p155, %p156
      %p159 = scmp.ne.s32.totalorder %s142, %s158
      %p160 = scmp.eq.s32.totalorder %s24, 0
      %p161 = por %p159, %p160
      %p162 = scmp.le.s32.totalorder 1, %s18
      %p163 = scmp.lt.s32.totalorder %s18, 3
      %p164 = pnand %p162, %p163
      %p165 = pneg %p164
      // Predicated region
      $region9: #{tpu_custom_call.1} parent=5 // pred_check
        _
      $region10: #{tpu_custom_call.1} parent=5 // pred_check_branch
        %167 = sbr.rel (%p164) target = $region12
      $region11: #{tpu_custom_call.1} parent=5 // pred_region
        %s168 = ssub.s32 %s18, 1
        // Predicated region
        $region13: #{tpu_custom_call.1} parent=11 // pred_check
          %p169 = pneg %p65
        $region14: #{tpu_custom_call.1} parent=11 // pred_check_branch
          %171 = sbr.rel (%p169) target = $region16
        $region15: #{tpu_custom_call.1} parent=11 // pred_region
          %s173 = ssub.s32 1536, 1536
          %174 = vsyncadd [#allocation8], %s173
          %s175 = sshll.u32 [#allocation7], 4
          %s176 = int_to_ptr.vmem [resolvable:$true] %s175
          %181 = dma.hbm_to_vmem [thread:$0]  %s1, 1536, %s176, [#allocation8], 64, 64, 4
        $region16: #{tpu_custom_call.1} parent=11 // pred_fallthru
          _
        // Predicated region
        $region17: #{tpu_custom_call.1} parent=11 // pred_check
          %p182 = pneg %p86
        $region18: #{tpu_custom_call.1} parent=11 // pred_check_branch
          %184 = sbr.rel (%p182) target = $region20
        $region19: #{tpu_custom_call.1} parent=11 // pred_region
          _
        $region20: #{tpu_custom_call.1} parent=11 // pred_fallthru
          _
        // Predicated region
        $region21: #{tpu_custom_call.1} parent=11 // pred_check
          %p185 = pneg %p107
        $region22: #{tpu_custom_call.1} parent=11 // pred_check_branch
          %187 = sbr.rel (%p185) target = $region24
        $region23: #{tpu_custom_call.1} parent=11 // pred_region
          %s189 = ssub.s32 3072, 3072
          %190 = vsyncadd [#allocation8], %s189
          %s191 = sshll.u32 [#allocation9], 4
          %s192 = int_to_ptr.vmem [resolvable:$true] %s191
          %197 = dma.hbm_to_vmem [thread:$0]  %s3, 3072, %s192, [#allocation8], 64, 64, 4
        $region24: #{tpu_custom_call.1} parent=11 // pred_fallthru
          _
        // Predicated region
        $region25: #{tpu_custom_call.1} parent=11 // pred_check
          %p198 = pneg %p128
        $region26: #{tpu_custom_call.1} parent=11 // pred_check_branch
          %200 = sbr.rel (%p198) target = $region28
        $region27: #{tpu_custom_call.1} parent=11 // pred_region
          _
        $region28: #{tpu_custom_call.1} parent=11 // pred_fallthru
          _
      $region12: #{tpu_custom_call.1} parent=5 // pred_fallthru
        _
      %p201 = scmp.lt.s32.totalorder %s18, 2
      // Predicated region
      $region29: #{tpu_custom_call.1} parent=5 // pred_check
        %p202 = pneg %p201
      $region30: #{tpu_custom_call.1} parent=5 // pred_check_branch
        %204 = sbr.rel (%p202) target = $region32
      $region31: #{tpu_custom_call.1} parent=5 // pred_region
        // Predicated region
        $region33: #{tpu_custom_call.1} parent=31 // pred_check
          %p205 = pneg %p38
        $region34: #{tpu_custom_call.1} parent=31 // pred_check_branch
          %207 = sbr.rel (%p205) target = $region36
        $region35: #{tpu_custom_call.1} parent=31 // pred_region
          %s208 = sand.u32 %s28, 1
          %s209 = scalar_lea.sflag [#allocation5], %s208
          %s210 = sand.u32 %s28, 1
          %s211 = smul.addr %s210, 8
          %s212 = scalar_lea.vmem [#allocation4], %s211
          %s214 = ssub.s32 128, 128
          %215 = vsyncadd %s209, %s214
          %s216 = smul.addr %s18, 2
          %s217 = smul.addr %s216, 64
          %s218 = scalar_lea.hbm %s0, %s217
          %s219 = sshll.u32 %s212, 4
          %s220 = int_to_ptr.vmem [resolvable:$true] %s219
          %225 = dma.hbm_to_vmem [thread:$0]  %s218, 128, %s220, %s209, 64, 64, 4
        $region36: #{tpu_custom_call.1} parent=31 // pred_fallthru
          _
      $region32: #{tpu_custom_call.1} parent=5 // pred_fallthru
        _
      %p226 = scmp.le.s32.totalorder 1, %s18
      %p227 = scmp.lt.s32.totalorder %s18, 3
      %p228 = pnand %p226, %p227
      %p229 = pneg %p228
      // Predicated region
      $region37: #{tpu_custom_call.1} parent=5 // pred_check
        _
      $region38: #{tpu_custom_call.1} parent=5 // pred_check_branch
        %231 = sbr.rel (%p228) target = $region40
      $region39: #{tpu_custom_call.1} parent=5 // pred_region
        %s232 = ssub.s32 %s18, 1
        %s233 = sand.u32 %s31, 1
        %s234 = scalar_lea.sflag [#allocation5], %s233
        %s235 = sand.u32 %s31, 1
        %s236 = smul.addr %s235, 8
        %s237 = scalar_lea.vmem [#allocation4], %s236
        // Predicated region
        $region41: #{tpu_custom_call.1} parent=39 // pred_check
          %p238 = pneg %p44
        $region42: #{tpu_custom_call.1} parent=39 // pred_check_branch
          %240 = sbr.rel (%p238) target = $region44
        $region43: #{tpu_custom_call.1} parent=39 // pred_region
          %241 = dma.done %s234, 128
        $region44: #{tpu_custom_call.1} parent=39 // pred_fallthru
          _
        // Predicated region
        $region45: #{tpu_custom_call.1} parent=39 // pred_check
          %p242 = pneg %p65
        $region46: #{tpu_custom_call.1} parent=39 // pred_check_branch
          %244 = sbr.rel (%p242) target = $region48
        $region47: #{tpu_custom_call.1} parent=39 // pred_region
          %245 = dma.done [#allocation8], 1536
        $region48: #{tpu_custom_call.1} parent=39 // pred_fallthru
          _
        // Predicated region
        $region49: #{tpu_custom_call.1} parent=39 // pred_check
          %p246 = pneg %p107
        $region50: #{tpu_custom_call.1} parent=39 // pred_check_branch
          %248 = sbr.rel (%p246) target = $region52
        $region51: #{tpu_custom_call.1} parent=39 // pred_region
          %249 = dma.done [#allocation8], 3072
        $region52: #{tpu_custom_call.1} parent=39 // pred_fallthru
          _
        %s250 = sand.u32 %s31, 1
        %s251 = scalar_lea.sflag [#allocation5], %s250
        %s252 = sand.u32 %s31, 1
        %s253 = smul.addr %s252, 8
        %s254 = scalar_lea.vmem [#allocation4], %s253
        %p255 = pneg %p44
        %p256 = pneg %p41
        %p257 = pneg %p65
        %p258 = pneg %p62
        %p259 = pneg %p86
        %p260 = pneg %p83
        %p261 = pneg %p107
        %p262 = pneg %p104
        %p263 = pneg %p128
        %p264 = pneg %p125
        %p265 = pneg %p154
        %p266 = pneg %p151
        %s267 = sand.u32 %s141, 1
        %s268 = scalar_lea.sflag [#allocation6], %s267
        %s269 = sand.u32 %s141, 1
        %s270 = smul.addr %s269, 16
        %s271 = scalar_lea.vmem [#allocation10], %s270
        %vm273 = vcmask 516096
        %vm274 = vsmask.f32 256
        %vm275 = vmand %vm273, %vm274
        %v276 = vld [vmem:[#allocation2] sm:$0x1]
        %v277 = vsel %vm275, 0, %v276
        %278 = vst [vmem:[#allocation2] sm:$0x1] %v277
        %vm279 = vsmask.f32 7938
        %vm280 = vmand %vm273, %vm279
        %v281 = vld [vmem:[#allocation2 + $0x8] sm:$0x1]
        %v282 = vsel %vm280, 0, %v281
        %283 = vst [vmem:[#allocation2 + $0x8] sm:$0x1] %v282
        %v284 = vld [vmem:[%s237] sm:$0xf]
        %v285 = vld [vmem:[%s237 + $0x4] sm:$0xf]
        %vm286 = vsmask.f32 4368
        %vm287 = vmor %vm274, %vm286
        %v289 = vshrl.u32 %v284, 16
        %v291 = vrot.slane %v289, 7
        %v292 = vshll.u32 %v284, 16
        %v294 = vor.u32 %v291, %v292
        %v295 = vrot.slane %v291, 4
        %v297 = vshrl.u32 %v285, 16
        %v299 = vrot.slane %v297, 7
        %v300 = vshll.u32 %v285, 16
        %v302 = vor.u32 %v299, %v300
        %v303 = vsel %vm287, %v295, %v302
        %v304 = vrot.slane %v299, 4
        %vm308 = vcmask 519168
        %vm309 = vmand %vm308, %vm279
        %v310 = vld [vmem:[#allocation2] sm:$0xf]
        %v311 = vsel %vm309, %v294, %v310
        %312 = vst [vmem:[#allocation2] sm:$0xf] %v311
        %vm313 = vcmask 519168
        %314 = vst.msk [vmem:[#allocation2 + $0x4] sm:$0xf] %vm313, %v303
        %v315 = vld [vmem:[#allocation2 + $0x8] sm:$0x1]
        %v316 = vsel %vm275, %v304, %v315
        %317 = vst [vmem:[#allocation2 + $0x8] sm:$0x1] %v316
        %v318 = vld [vmem:[%s2] sm:$0x1]
        %v320 = vlaneseq
        %v321 = vshrl.u32 %v320, 7
        %v322 = vsub.s32 0, %v321
        %v323 = vrot.slane %v318, %v322
        %v325 = vld [vmem:[#allocation2] sm:$0xf]
        %v326 = vld [vmem:[#allocation2 + $0x4] sm:$0xf]
        %v327 = vld [vmem:[#allocation7] sm:$0xf]
        %v328 = vld [vmem:[#allocation7 + $0x4] sm:$0xf]
        %v329 = vld [vmem:[#allocation7 + $0x8] sm:$0xf]
        %v330 = vld [vmem:[#allocation7 + $0xc] sm:$0xf]
        %v331 = vld [vmem:[#allocation7 + $0x10] sm:$0xf]
        %v332 = vld [vmem:[#allocation7 + $0x14] sm:$0xf]
        %v333 = vld [vmem:[#allocation7 + $0x18] sm:$0xf]
        %v334 = vld [vmem:[#allocation7 + $0x1c] sm:$0xf]
        %v337 = vunpack.c.l.b16 %v325
        %v338 = vunpack.c.l.b16 %v326
        %v339 = vpack.c.b16 %v338, %v337
        %v348 = vunpack.c.l.b16 %v327
        %v349 = vunpack.c.l.b16 %v328
        %v350 = vunpack.c.l.b16 %v329
        %v351 = vunpack.c.l.b16 %v330
        %v352 = vunpack.c.l.b16 %v331
        %v353 = vunpack.c.l.b16 %v332
        %v354 = vunpack.c.l.b16 %v333
        %v355 = vunpack.c.l.b16 %v334
        %v356 = vpack.c.b16 %v349, %v348
        %v357 = vpack.c.b16 %v351, %v350
        %v358 = vpack.c.b16 %v353, %v352
        %v359 = vpack.c.b16 %v355, %v354
        %vm364 = vcmask 523264
        %v366 = vsel %vm364, %v339, 0
        %368 = vmatprep.subr.bf16.mxu0 0
        %369 = vmatpush1.bf16.msra.mxu0 %v356
        %370 = vmatprep.subr.bf16.mxu0 0
        %371 = vmatpush1.bf16.msra.mxu0 %v357
        %372 = vmatprep.subr.bf16.mxu0 0
        %373 = vmatpush1.bf16.msra.mxu0 %v358
        %374 = vmatprep.subr.bf16.mxu0 0
        %375 = vmatpush1.bf16.msra.mxu0 %v359
        %376 = vmatprep.subr.bf16.mxu0 0
        %377 = vmatpush1.bf16.msra.mxu0 0
        %378 = vmatprep.subr.bf16.mxu0 0
        %379 = vmatpush1.bf16.msra.mxu0 0
        %380 = vmatprep.subr.bf16.mxu0 0
        %381 = vmatpush1.bf16.msra.mxu0 0
        %382 = vmatprep.subr.bf16.mxu0 0
        %383 = vmatpush1.bf16.msra.mxu0 0
        %384 = vmatprep.subr.bf16.mxu0 0
        %385 = vmatpush1.bf16.msra.mxu0 0
        %386 = vmatprep.subr.bf16.mxu0 0
        %387 = vmatpush1.bf16.msra.mxu0 0
        %388 = vmatprep.subr.bf16.mxu0 0
        %389 = vmatpush1.bf16.msra.mxu0 0
        %390 = vmatprep.subr.bf16.mxu0 0
        %391 = vmatpush1.bf16.msra.mxu0 0
        %392 = vmatprep.subr.bf16.mxu0 0
        %393 = vmatpush1.bf16.msra.mxu0 0
        %394 = vmatprep.subr.bf16.mxu0 0
        %395 = vmatpush1.bf16.msra.mxu0 0
        %396 = vmatprep.subr.bf16.mxu0 0
        %397 = vmatpush1.bf16.msra.mxu0 0
        %398 = vmatprep.subr.bf16.mxu0 0
        %399 = vmatpush1.bf16.msra.mxu0 0
        %400 = vmatprep.mubr.bf16.mxu0 0
        %401 = vmatmul.mubr.bf16.gmra.mrb[0].mxu0 %v366
        %v402 = vpop.f32.mrb[0].mxu0
        %v403 = vadd.f32 0.0, %v402
        %v404 = vpop.f32.mrb[0].mxu0
        %v405 = vpop.f32.mrb[0].mxu0
        %v406 = vadd.f32 0.0, %v405
        %v407 = vpop.f32.mrb[0].mxu0
        %408 = vdwg.mxu0
        %v409 = vadd.f32 %v323, %v403
        %v410 = vadd.f32 %v323, %v406
        %v411 = vld [vmem:[#allocation2] sm:$0xf]
        %v412 = vld [vmem:[#allocation2 + $0x4] sm:$0xf]
        %v413 = vld [vmem:[#allocation2 + $0x8] sm:$0x1]
        %s414 = scalar_lea.vmem [#allocation7], 32
        %v415 = vld [vmem:[%s414] sm:$0xf]
        %v416 = vld [vmem:[%s414 + $0x4] sm:$0xf]
        %v417 = vld [vmem:[%s414 + $0x8] sm:$0xf]
        %v418 = vld [vmem:[%s414 + $0xc] sm:$0xf]
        %v419 = vld [vmem:[%s414 + $0x10] sm:$0xf]
        %v420 = vld [vmem:[%s414 + $0x14] sm:$0xf]
        %v421 = vld [vmem:[%s414 + $0x18] sm:$0xf]
        %v422 = vld [vmem:[%s414 + $0x1c] sm:$0xf]
        %v426 = vunpack.c.l.b16 %v411
        %v427 = vunpack.c.l.b16 %v412
        %v428 = vunpack.c.l.b16 %v413
        %v429 = vpack.c.b16 %v427, %v426
        %v430 = vpack.c.b16 %v428, %v428
        %vm431 = vsmask.f32 7424
        %v433 = vshrl.u32 %v429, 16
        %v435 = vshll.u32 %v429, 16
        %v437 = vrot.slane %v435, 1
        %v438 = vor.u32 %v433, %v437
        %v440 = vshll.u32 %v430, 16
        %v442 = vrot.slane %v440, 1
        %v443 = vsel %vm431, %v438, %v442
        %v452 = vunpack.c.l.b16 %v415
        %v453 = vunpack.c.l.b16 %v416
        %v454 = vunpack.c.l.b16 %v417
        %v455 = vunpack.c.l.b16 %v418
        %v456 = vunpack.c.l.b16 %v419
        %v457 = vunpack.c.l.b16 %v420
        %v458 = vunpack.c.l.b16 %v421
        %v459 = vunpack.c.l.b16 %v422
        %v460 = vpack.c.b16 %v453, %v452
        %v461 = vpack.c.b16 %v455, %v454
        %v462 = vpack.c.b16 %v457, %v456
        %v463 = vpack.c.b16 %v459, %v458
        %v469 = vsel %vm364, %v443, 0
        %471 = vmatprep.subr.bf16.mxu0 0
        %472 = vmatpush1.bf16.msra.mxu0 %v460
        %473 = vmatprep.subr.bf16.mxu0 0
        %474 = vmatpush1.bf16.msra.mxu0 %v461
        %475 = vmatprep.subr.bf16.mxu0 0
        %476 = vmatpush1.bf16.msra.mxu0 %v462
        %477 = vmatprep.subr.bf16.mxu0 0
        %478 = vmatpush1.bf16.msra.mxu0 %v463
        %479 = vmatprep.subr.bf16.mxu0 0
        %480 = vmatpush1.bf16.msra.mxu0 0
        %481 = vmatprep.subr.bf16.mxu0 0
        %482 = vmatpush1.bf16.msra.mxu0 0
        %483 = vmatprep.subr.bf16.mxu0 0
        %484 = vmatpush1.bf16.msra.mxu0 0
        %485 = vmatprep.subr.bf16.mxu0 0
        %486 = vmatpush1.bf16.msra.mxu0 0
        %487 = vmatprep.subr.bf16.mxu0 0
        %488 = vmatpush1.bf16.msra.mxu0 0
        %489 = vmatprep.subr.bf16.mxu0 0
        %490 = vmatpush1.bf16.msra.mxu0 0
        %491 = vmatprep.subr.bf16.mxu0 0
        %492 = vmatpush1.bf16.msra.mxu0 0
        %493 = vmatprep.subr.bf16.mxu0 0
        %494 = vmatpush1.bf16.msra.mxu0 0
        %495 = vmatprep.subr.bf16.mxu0 0
        %496 = vmatpush1.bf16.msra.mxu0 0
        %497 = vmatprep.subr.bf16.mxu0 0
        %498 = vmatpush1.bf16.msra.mxu0 0
        %499 = vmatprep.subr.bf16.mxu0 0
        %500 = vmatpush1.bf16.msra.mxu0 0
        %501 = vmatprep.subr.bf16.mxu0 0
        %502 = vmatpush1.bf16.msra.mxu0 0
        %503 = vmatprep.mubr.bf16.mxu0 0
        %504 = vmatmul.mubr.bf16.gmra.mrb[0].mxu0 %v469
        %v505 = vpop.f32.mrb[0].mxu0
        %v506 = vadd.f32 0.0, %v505
        %v507 = vpop.f32.mrb[0].mxu0
        %v508 = vpop.f32.mrb[0].mxu0
        %v509 = vadd.f32 0.0, %v508
        %v510 = vpop.f32.mrb[0].mxu0
        %511 = vdwg.mxu0
        %v512 = vadd.f32 %v409, %v506
        %v513 = vadd.f32 %v410, %v509
        %v514 = vld [vmem:[#allocation2] sm:$0xe]
        %s515 = scalar_lea.vmem [#allocation7], 64
        %v516 = vld [vmem:[%s515] sm:$0xf]
        %v517 = vld [vmem:[%s515 + $0x4] sm:$0xf]
        %v518 = vld [vmem:[%s515 + $0x8] sm:$0xf]
        %v519 = vld [vmem:[%s515 + $0xc] sm:$0xf]
        %v520 = vld [vmem:[%s515 + $0x10] sm:$0xf]
        %v521 = vld [vmem:[%s515 + $0x14] sm:$0xf]
        %v522 = vld [vmem:[%s515 + $0x18] sm:$0xf]
        %v523 = vld [vmem:[%s515 + $0x1c] sm:$0xf]
        %v525 = vunpack.c.l.b16 %v514
        %v526 = vpack.c.b16 %v427, %v525
        %vm527 = vcmask 1046528
        %v528 = vrot.slane %v526, 1
        %v529 = vrot.slane %v430, 1
        %v530 = vsel %vm527, %v528, %v529
        %v539 = vunpack.c.l.b16 %v516
        %v540 = vunpack.c.l.b16 %v517
        %v541 = vunpack.c.l.b16 %v518
        %v542 = vunpack.c.l.b16 %v519
        %v543 = vunpack.c.l.b16 %v520
        %v544 = vunpack.c.l.b16 %v521
        %v545 = vunpack.c.l.b16 %v522
        %v546 = vunpack.c.l.b16 %v523
        %v547 = vpack.c.b16 %v540, %v539
        %v548 = vpack.c.b16 %v542, %v541
        %v549 = vpack.c.b16 %v544, %v543
        %v550 = vpack.c.b16 %v546, %v545
        %v556 = vsel %vm364, %v530, 0
        %558 = vmatprep.subr.bf16.mxu0 0
        %559 = vmatpush1.bf16.msra.mxu0 %v547
        %560 = vmatprep.subr.bf16.mxu0 0
        %561 = vmatpush1.bf16.msra.mxu0 %v548
        %562 = vmatprep.subr.bf16.mxu0 0
        %563 = vmatpush1.bf16.msra.mxu0 %v549
        %564 = vmatprep.subr.bf16.mxu0 0
        %565 = vmatpush1.bf16.msra.mxu0 %v550
        %566 = vmatprep.subr.bf16.mxu0 0
        %567 = vmatpush1.bf16.msra.mxu0 0
        %568 = vmatprep.subr.bf16.mxu0 0
        %569 = vmatpush1.bf16.msra.mxu0 0
        %570 = vmatprep.subr.bf16.mxu0 0
        %571 = vmatpush1.bf16.msra.mxu0 0
        %572 = vmatprep.subr.bf16.mxu0 0
        %573 = vmatpush1.bf16.msra.mxu0 0
        %574 = vmatprep.subr.bf16.mxu0 0
        %575 = vmatpush1.bf16.msra.mxu0 0
        %576 = vmatprep.subr.bf16.mxu0 0
        %577 = vmatpush1.bf16.msra.mxu0 0
        %578 = vmatprep.subr.bf16.mxu0 0
        %579 = vmatpush1.bf16.msra.mxu0 0
        %580 = vmatprep.subr.bf16.mxu0 0
        %581 = vmatpush1.bf16.msra.mxu0 0
        %582 = vmatprep.subr.bf16.mxu0 0
        %583 = vmatpush1.bf16.msra.mxu0 0
        %584 = vmatprep.subr.bf16.mxu0 0
        %585 = vmatpush1.bf16.msra.mxu0 0
        %586 = vmatprep.subr.bf16.mxu0 0
        %587 = vmatpush1.bf16.msra.mxu0 0
        %588 = vmatprep.subr.bf16.mxu0 0
        %589 = vmatpush1.bf16.msra.mxu0 0
        %590 = vmatprep.mubr.bf16.mxu0 0
        %591 = vmatmul.mubr.bf16.gmra.mrb[0].mxu0 %v556
        %v592 = vpop.f32.mrb[0].mxu0
        %v593 = vadd.f32 0.0, %v592
        %v594 = vpop.f32.mrb[0].mxu0
        %v595 = vpop.f32.mrb[0].mxu0
        %v596 = vadd.f32 0.0, %v595
        %v597 = vpop.f32.mrb[0].mxu0
        %598 = vdwg.mxu0
        %v599 = vadd.f32 %v512, %v593
        %v600 = vadd.f32 %v513, %v596
        %v601 = vmax.f32 %v599, 0.0
        %v602 = vmax.f32 %v600, 0.0
        %vm603 = vcmask 1040384
        %vm604 = vmand %vm603, %vm274
        %v605 = vld [vmem:[#allocation3] sm:$0x1]
        %v606 = vsel %vm604, 0, %v605
        %607 = vst [vmem:[#allocation3] sm:$0x1] %v606
        %vm608 = vmand %vm603, %vm279
        %v609 = vld [vmem:[#allocation3 + $0x8] sm:$0x1]
        %v610 = vsel %vm608, 0, %v609
        %611 = vst [vmem:[#allocation3 + $0x8] sm:$0x1] %v610
        %v612 = vpack.c.bf16 %v602, %v601
        %v614 = vunpack.c.l.b16 %v612
        %v615 = vunpack.c.h.b16 %v612
        %v616 = vpack.c.b16 %v614, %v614
        %v617 = vpack.c.b16 %v615, %v615
        %v619 = vshrl.u32 %v616, 16
        %v621 = vrot.slane %v619, 7
        %v622 = vshll.u32 %v616, 16
        %v624 = vor.u32 %v621, %v622
        %v625 = vrot.slane %v621, 4
        %v627 = vshrl.u32 %v617, 16
        %v629 = vrot.slane %v627, 7
        %v630 = vshll.u32 %v617, 16
        %v632 = vor.u32 %v629, %v630
        %v633 = vsel %vm287, %v625, %v632
        %v634 = vrot.slane %v629, 4
        %vm638 = vcmask 1043456
        %vm639 = vmand %vm638, %vm279
        %v640 = vld [vmem:[#allocation3] sm:$0xf]
        %v641 = vsel %vm639, %v624, %v640
        %642 = vst [vmem:[#allocation3] sm:$0xf] %v641
        %643 = vst [vmem:[#allocation3 + $0x4] sm:$0xf] %v633
        %v644 = vld [vmem:[#allocation3 + $0x8] sm:$0x1]
        %v645 = vsel %vm604, %v634, %v644
        %646 = vst [vmem:[#allocation3 + $0x8] sm:$0x1] %v645
        %v647 = vld [vmem:[%s4] sm:$0x1]
        %v649 = vlaneseq
        %v650 = vshrl.u32 %v649, 7
        %v651 = vsub.s32 0, %v650
        %v652 = vrot.slane %v647, %v651
        %v654 = vld [vmem:[#allocation3] sm:$0xf]
        %v655 = vld [vmem:[#allocation3 + $0x4] sm:$0xf]
        %v656 = vld [vmem:[#allocation9] sm:$0xf]
        %v657 = vld [vmem:[#allocation9 + $0x4] sm:$0xf]
        %v658 = vld [vmem:[#allocation9 + $0x8] sm:$0xf]
        %v659 = vld [vmem:[#allocation9 + $0xc] sm:$0xf]
        %v660 = vld [vmem:[#allocation9 + $0x10] sm:$0xf]
        %v661 = vld [vmem:[#allocation9 + $0x14] sm:$0xf]
        %v662 = vld [vmem:[#allocation9 + $0x18] sm:$0xf]
        %v663 = vld [vmem:[#allocation9 + $0x1c] sm:$0xf]
        %v664 = vld [vmem:[#allocation9 + $0x20] sm:$0xf]
        %v665 = vld [vmem:[#allocation9 + $0x24] sm:$0xf]
        %v666 = vld [vmem:[#allocation9 + $0x28] sm:$0xf]
        %v667 = vld [vmem:[#allocation9 + $0x2c] sm:$0xf]
        %v668 = vld [vmem:[#allocation9 + $0x30] sm:$0xf]
        %v669 = vld [vmem:[#allocation9 + $0x34] sm:$0xf]
        %v670 = vld [vmem:[#allocation9 + $0x38] sm:$0xf]
        %v671 = vld [vmem:[#allocation9 + $0x3c] sm:$0xf]
        %v674 = vunpack.c.l.b16 %v654
        %v675 = vunpack.c.l.b16 %v655
        %v676 = vpack.c.b16 %v675, %v674
        %v694 = vunpack.c.l.b16 %v656
        %v695 = vunpack.c.l.b16 %v657
        %v696 = vunpack.c.l.b16 %v658
        %v697 = vunpack.c.l.b16 %v659
        %v698 = vunpack.c.l.b16 %v660
        %v699 = vunpack.c.l.b16 %v661
        %v700 = vunpack.c.l.b16 %v662
        %v701 = vunpack.c.l.b16 %v663
        %v702 = vunpack.c.l.b16 %v664
        %v703 = vunpack.c.l.b16 %v665
        %v704 = vunpack.c.l.b16 %v666
        %v705 = vunpack.c.l.b16 %v667
        %v706 = vunpack.c.l.b16 %v668
        %v707 = vunpack.c.l.b16 %v669
        %v708 = vunpack.c.l.b16 %v670
        %v709 = vunpack.c.l.b16 %v671
        %v710 = vpack.c.b16 %v695, %v694
        %v711 = vpack.c.b16 %v697, %v696
        %v712 = vpack.c.b16 %v699, %v698
        %v713 = vpack.c.b16 %v701, %v700
        %v714 = vpack.c.b16 %v703, %v702
        %v715 = vpack.c.b16 %v705, %v704
        %v716 = vpack.c.b16 %v707, %v706
        %v717 = vpack.c.b16 %v709, %v708
        %726 = vmatprep.subr.bf16.mxu0 0
        %727 = vmatpush1.bf16.msra.mxu0 %v710
        %728 = vmatprep.subr.bf16.mxu0 0
        %729 = vmatpush1.bf16.msra.mxu0 %v711
        %730 = vmatprep.subr.bf16.mxu0 0
        %731 = vmatpush1.bf16.msra.mxu0 %v712
        %732 = vmatprep.subr.bf16.mxu0 0
        %733 = vmatpush1.bf16.msra.mxu0 %v713
        %734 = vmatprep.subr.bf16.mxu0 0
        %735 = vmatpush1.bf16.msra.mxu0 %v714
        %736 = vmatprep.subr.bf16.mxu0 0
        %737 = vmatpush1.bf16.msra.mxu0 %v715
        %738 = vmatprep.subr.bf16.mxu0 0
        %739 = vmatpush1.bf16.msra.mxu0 %v716
        %740 = vmatprep.subr.bf16.mxu0 0
        %741 = vmatpush1.bf16.msra.mxu0 %v717
        %742 = vmatprep.subr.bf16.mxu0 0
        %743 = vmatpush1.bf16.msra.mxu0 0
        %744 = vmatprep.subr.bf16.mxu0 0
        %745 = vmatpush1.bf16.msra.mxu0 0
        %746 = vmatprep.subr.bf16.mxu0 0
        %747 = vmatpush1.bf16.msra.mxu0 0
        %748 = vmatprep.subr.bf16.mxu0 0
        %749 = vmatpush1.bf16.msra.mxu0 0
        %750 = vmatprep.subr.bf16.mxu0 0
        %751 = vmatpush1.bf16.msra.mxu0 0
        %752 = vmatprep.subr.bf16.mxu0 0
        %753 = vmatpush1.bf16.msra.mxu0 0
        %754 = vmatprep.subr.bf16.mxu0 0
        %755 = vmatpush1.bf16.msra.mxu0 0
        %756 = vmatprep.subr.bf16.mxu0 0
        %757 = vmatpush1.bf16.msra.mxu0 0
        %758 = vmatprep.mubr.bf16.mxu0 0
        %759 = vmatmul.mubr.bf16.gmra.mrb[0].mxu0 %v676
        %v760 = vpop.f32.mrb[0].mxu0
        %v761 = vadd.f32 0.0, %v760
        %v762 = vpop.f32.mrb[0].mxu0
        %v763 = vpop.f32.mrb[0].mxu0
        %v764 = vadd.f32 0.0, %v763
        %v765 = vpop.f32.mrb[0].mxu0
        %766 = vdwg.mxu0
        %v767 = vadd.f32 %v652, %v761
        %v768 = vadd.f32 %v652, %v764
        %v769 = vld [vmem:[#allocation3] sm:$0xf]
        %v770 = vld [vmem:[#allocation3 + $0x4] sm:$0xf]
        %v771 = vld [vmem:[#allocation3 + $0x8] sm:$0x1]
        %s772 = scalar_lea.vmem [#allocation9], 64
        %v773 = vld [vmem:[%s772] sm:$0xf]
        %v774 = vld [vmem:[%s772 + $0x4] sm:$0xf]
        %v775 = vld [vmem:[%s772 + $0x8] sm:$0xf]
        %v776 = vld [vmem:[%s772 + $0xc] sm:$0xf]
        %v777 = vld [vmem:[%s772 + $0x10] sm:$0xf]
        %v778 = vld [vmem:[%s772 + $0x14] sm:$0xf]
        %v779 = vld [vmem:[%s772 + $0x18] sm:$0xf]
        %v780 = vld [vmem:[%s772 + $0x1c] sm:$0xf]
        %v781 = vld [vmem:[%s772 + $0x20] sm:$0xf]
        %v782 = vld [vmem:[%s772 + $0x24] sm:$0xf]
        %v783 = vld [vmem:[%s772 + $0x28] sm:$0xf]
        %v784 = vld [vmem:[%s772 + $0x2c] sm:$0xf]
        %v785 = vld [vmem:[%s772 + $0x30] sm:$0xf]
        %v786 = vld [vmem:[%s772 + $0x34] sm:$0xf]
        %v787 = vld [vmem:[%s772 + $0x38] sm:$0xf]
        %v788 = vld [vmem:[%s772 + $0x3c] sm:$0xf]
        %v792 = vunpack.c.l.b16 %v769
        %v793 = vunpack.c.l.b16 %v770
        %v794 = vunpack.c.l.b16 %v771
        %v795 = vpack.c.b16 %v793, %v792
        %v796 = vpack.c.b16 %v794, %v794
        %v798 = vshrl.u32 %v795, 16
        %v800 = vshll.u32 %v795, 16
        %v802 = vrot.slane %v800, 1
        %v803 = vor.u32 %v798, %v802
        %v805 = vshll.u32 %v796, 16
        %v807 = vrot.slane %v805, 1
        %v808 = vsel %vm431, %v803, %v807
        %v826 = vunpack.c.l.b16 %v773
        %v827 = vunpack.c.l.b16 %v774
        %v828 = vunpack.c.l.b16 %v775
        %v829 = vunpack.c.l.b16 %v776
        %v830 = vunpack.c.l.b16 %v777
        %v831 = vunpack.c.l.b16 %v778
        %v832 = vunpack.c.l.b16 %v779
        %v833 = vunpack.c.l.b16 %v780
        %v834 = vunpack.c.l.b16 %v781
        %v835 = vunpack.c.l.b16 %v782
        %v836 = vunpack.c.l.b16 %v783
        %v837 = vunpack.c.l.b16 %v784
        %v838 = vunpack.c.l.b16 %v785
        %v839 = vunpack.c.l.b16 %v786
        %v840 = vunpack.c.l.b16 %v787
        %v841 = vunpack.c.l.b16 %v788
        %v842 = vpack.c.b16 %v827, %v826
        %v843 = vpack.c.b16 %v829, %v828
        %v844 = vpack.c.b16 %v831, %v830
        %v845 = vpack.c.b16 %v833, %v832
        %v846 = vpack.c.b16 %v835, %v834
        %v847 = vpack.c.b16 %v837, %v836
        %v848 = vpack.c.b16 %v839, %v838
        %v849 = vpack.c.b16 %v841, %v840
        %858 = vmatprep.subr.bf16.mxu0 0
        %859 = vmatpush1.bf16.msra.mxu0 %v842
        %860 = vmatprep.subr.bf16.mxu0 0
        %861 = vmatpush1.bf16.msra.mxu0 %v843
        %862 = vmatprep.subr.bf16.mxu0 0
        %863 = vmatpush1.bf16.msra.mxu0 %v844
        %864 = vmatprep.subr.bf16.mxu0 0
        %865 = vmatpush1.bf16.msra.mxu0 %v845
        %866 = vmatprep.subr.bf16.mxu0 0
        %867 = vmatpush1.bf16.msra.mxu0 %v846
        %868 = vmatprep.subr.bf16.mxu0 0
        %869 = vmatpush1.bf16.msra.mxu0 %v847
        %870 = vmatprep.subr.bf16.mxu0 0
        %871 = vmatpush1.bf16.msra.mxu0 %v848
        %872 = vmatprep.subr.bf16.mxu0 0
        %873 = vmatpush1.bf16.msra.mxu0 %v849
        %874 = vmatprep.subr.bf16.mxu0 0
        %875 = vmatpush1.bf16.msra.mxu0 0
        %876 = vmatprep.subr.bf16.mxu0 0
        %877 = vmatpush1.bf16.msra.mxu0 0
        %878 = vmatprep.subr.bf16.mxu0 0
        %879 = vmatpush1.bf16.msra.mxu0 0
        %880 = vmatprep.subr.bf16.mxu0 0
        %881 = vmatpush1.bf16.msra.mxu0 0
        %882 = vmatprep.subr.bf16.mxu0 0
        %883 = vmatpush1.bf16.msra.mxu0 0
        %884 = vmatprep.subr.bf16.mxu0 0
        %885 = vmatpush1.bf16.msra.mxu0 0
        %886 = vmatprep.subr.bf16.mxu0 0
        %887 = vmatpush1.bf16.msra.mxu0 0
        %888 = vmatprep.subr.bf16.mxu0 0
        %889 = vmatpush1.bf16.msra.mxu0 0
        %890 = vmatprep.mubr.bf16.mxu0 0
        %891 = vmatmul.mubr.bf16.gmra.mrb[0].mxu0 %v808
        %v892 = vpop.f32.mrb[0].mxu0
        %v893 = vadd.f32 0.0, %v892
        %v894 = vpop.f32.mrb[0].mxu0
        %v895 = vpop.f32.mrb[0].mxu0
        %v896 = vadd.f32 0.0, %v895
        %v897 = vpop.f32.mrb[0].mxu0
        %898 = vdwg.mxu0
        %v899 = vadd.f32 %v767, %v893
        %v900 = vadd.f32 %v768, %v896
        %v901 = vld [vmem:[#allocation3] sm:$0xe]
        %s902 = scalar_lea.vmem [#allocation9], 128
        %v903 = vld [vmem:[%s902] sm:$0xf]
        %v904 = vld [vmem:[%s902 + $0x4] sm:$0xf]
        %v905 = vld [vmem:[%s902 + $0x8] sm:$0xf]
        %v906 = vld [vmem:[%s902 + $0xc] sm:$0xf]
        %v907 = vld [vmem:[%s902 + $0x10] sm:$0xf]
        %v908 = vld [vmem:[%s902 + $0x14] sm:$0xf]
        %v909 = vld [vmem:[%s902 + $0x18] sm:$0xf]
        %v910 = vld [vmem:[%s902 + $0x1c] sm:$0xf]
        %v911 = vld [vmem:[%s902 + $0x20] sm:$0xf]
        %v912 = vld [vmem:[%s902 + $0x24] sm:$0xf]
        %v913 = vld [vmem:[%s902 + $0x28] sm:$0xf]
        %v914 = vld [vmem:[%s902 + $0x2c] sm:$0xf]
        %v915 = vld [vmem:[%s902 + $0x30] sm:$0xf]
        %v916 = vld [vmem:[%s902 + $0x34] sm:$0xf]
        %v917 = vld [vmem:[%s902 + $0x38] sm:$0xf]
        %v918 = vld [vmem:[%s902 + $0x3c] sm:$0xf]
        %v920 = vunpack.c.l.b16 %v901
        %v921 = vpack.c.b16 %v793, %v920
        %v922 = vrot.slane %v921, 1
        %v923 = vrot.slane %v796, 1
        %v924 = vsel %vm527, %v922, %v923
        %v942 = vunpack.c.l.b16 %v903
        %v943 = vunpack.c.l.b16 %v904
        %v944 = vunpack.c.l.b16 %v905
        %v945 = vunpack.c.l.b16 %v906
        %v946 = vunpack.c.l.b16 %v907
        %v947 = vunpack.c.l.b16 %v908
        %v948 = vunpack.c.l.b16 %v909
        %v949 = vunpack.c.l.b16 %v910
        %v950 = vunpack.c.l.b16 %v911
        %v951 = vunpack.c.l.b16 %v912
        %v952 = vunpack.c.l.b16 %v913
        %v953 = vunpack.c.l.b16 %v914
        %v954 = vunpack.c.l.b16 %v915
        %v955 = vunpack.c.l.b16 %v916
        %v956 = vunpack.c.l.b16 %v917
        %v957 = vunpack.c.l.b16 %v918
        %v958 = vpack.c.b16 %v943, %v942
        %v959 = vpack.c.b16 %v945, %v944
        %v960 = vpack.c.b16 %v947, %v946
        %v961 = vpack.c.b16 %v949, %v948
        %v962 = vpack.c.b16 %v951, %v950
        %v963 = vpack.c.b16 %v953, %v952
        %v964 = vpack.c.b16 %v955, %v954
        %v965 = vpack.c.b16 %v957, %v956
        %974 = vmatprep.subr.bf16.mxu0 0
        %975 = vmatpush1.bf16.msra.mxu0 %v958
        %976 = vmatprep.subr.bf16.mxu0 0
        %977 = vmatpush1.bf16.msra.mxu0 %v959
        %978 = vmatprep.subr.bf16.mxu0 0
        %979 = vmatpush1.bf16.msra.mxu0 %v960
        %980 = vmatprep.subr.bf16.mxu0 0
        %981 = vmatpush1.bf16.msra.mxu0 %v961
        %982 = vmatprep.subr.bf16.mxu0 0
        %983 = vmatpush1.bf16.msra.mxu0 %v962
        %984 = vmatprep.subr.bf16.mxu0 0
        %985 = vmatpush1.bf16.msra.mxu0 %v963
        %986 = vmatprep.subr.bf16.mxu0 0
        %987 = vmatpush1.bf16.msra.mxu0 %v964
        %988 = vmatprep.subr.bf16.mxu0 0
        %989 = vmatpush1.bf16.msra.mxu0 %v965
        %990 = vmatprep.subr.bf16.mxu0 0
        %991 = vmatpush1.bf16.msra.mxu0 0
        %992 = vmatprep.subr.bf16.mxu0 0
        %993 = vmatpush1.bf16.msra.mxu0 0
        %994 = vmatprep.subr.bf16.mxu0 0
        %995 = vmatpush1.bf16.msra.mxu0 0
        %996 = vmatprep.subr.bf16.mxu0 0
        %997 = vmatpush1.bf16.msra.mxu0 0
        %998 = vmatprep.subr.bf16.mxu0 0
        %999 = vmatpush1.bf16.msra.mxu0 0
        %1000 = vmatprep.subr.bf16.mxu0 0
        %1001 = vmatpush1.bf16.msra.mxu0 0
        %1002 = vmatprep.subr.bf16.mxu0 0
        %1003 = vmatpush1.bf16.msra.mxu0 0
        %1004 = vmatprep.subr.bf16.mxu0 0
        %1005 = vmatpush1.bf16.msra.mxu0 0
        %1006 = vmatprep.mubr.bf16.mxu0 0
        %1007 = vmatmul.mubr.bf16.gmra.mrb[0].mxu0 %v924
        %v1008 = vpop.f32.mrb[0].mxu0
        %v1009 = vadd.f32 0.0, %v1008
        %v1010 = vpop.f32.mrb[0].mxu0
        %v1011 = vpop.f32.mrb[0].mxu0
        %v1012 = vadd.f32 0.0, %v1011
        %v1013 = vpop.f32.mrb[0].mxu0
        %1014 = vdwg.mxu0
        %v1015 = vadd.f32 %v899, %v1009
        %v1016 = vadd.f32 %v900, %v1012
        %v1017 = vmax.f32 %v1015, 0.0
        %v1018 = vmax.f32 %v1016, 0.0
        %1019 = vst [vmem:[%s271] sm:$0xff] %v1017
        %1020 = vst [vmem:[%s271 + $0x8] sm:$0xff] %v1018
        %s1021 = sand.u32 %s141, 1
        %s1022 = scalar_lea.sflag [#allocation6], %s1021
        %s1023 = sand.u32 %s141, 1
        %s1024 = smul.addr %s1023, 16
        %s1025 = scalar_lea.vmem [#allocation10], %s1024
        // Predicated region
        $region53: #{tpu_custom_call.1} parent=39 // pred_check
          %p1026 = pneg %p151
        $region54: #{tpu_custom_call.1} parent=39 // pred_check_branch
          %1028 = sbr.rel (%p1026) target = $region56
        $region55: #{tpu_custom_call.1} parent=39 // pred_region
          %s1030 = ssub.s32 256, 256
          %1031 = vsyncadd %s1022, %s1030
          %s1032 = smul.addr %s23, 2
          %s1033 = smul.addr %s1032, 128
          %s1034 = scalar_lea.hbm %s5, %s1033
          %s1035 = sshll.u32 %s1025, 4
          %s1036 = int_to_ptr.vmem [resolvable:$true] %s1035
          %1041 = dma.vmem_to_hbm [thread:$0]  %s1036, 256, %s1034, %s1022, 128, 128, 8
        $region56: #{tpu_custom_call.1} parent=39 // pred_fallthru
          _
      $region40: #{tpu_custom_call.1} parent=5 // pred_fallthru
        _
      %p1042 = scmp.le.s32.totalorder 2, %s18
      // Predicated region
      $region57: #{tpu_custom_call.1} parent=5 // pred_check
        %p1043 = pneg %p1042
      $region58: #{tpu_custom_call.1} parent=5 // pred_check_branch
        %1045 = sbr.rel (%p1043) target = $region60
      $region59: #{tpu_custom_call.1} parent=5 // pred_region
        %s1046 = ssub.s32 %s18, 2
        // Predicated region
        $region61: #{tpu_custom_call.1} parent=59 // pred_check
          %p1047 = pneg %p157
        $region62: #{tpu_custom_call.1} parent=59 // pred_check_branch
          %1049 = sbr.rel (%p1047) target = $region64
        $region63: #{tpu_custom_call.1} parent=59 // pred_region
          %s1050 = sand.u32 %s142, 1
          %s1051 = scalar_lea.sflag [#allocation6], %s1050
          %s1052 = sand.u32 %s142, 1
          %s1053 = smul.addr %s1052, 16
          %s1054 = scalar_lea.vmem [#allocation10], %s1053
          %1055 = dma.done %s1051, 256
        $region64: #{tpu_custom_call.1} parent=59 // pred_fallthru
          _
      $region60: #{tpu_custom_call.1} parent=5 // pred_fallthru
        _
    $region6: #{tpu_custom_call.1} parent=1 // loop_footer
      %s22 = sadd.s32 1, %s18
    $region7: #{tpu_custom_call.1} parent=1 // loop_footer_branch
      %17 = sbr.rel target = $region3
    $region8: #{tpu_custom_call.1} parent=1 // loop_exit
      _
    %1056 = vsyncpa [#allocation5], 1
    %s1057 = scalar_lea.sflag [#allocation5], 1
    %1058 = vsyncpa %s1057, 1
    %1059 = vsyncpa [#allocation8], 1
    %1060 = vsyncpa [#allocation6], 1
    %s1061 = scalar_lea.sflag [#allocation6], 1
    %1062 = vsyncpa %s1061, 1

</llo_original>
